<compile_context>
chip_gen: v7x
topology: tpu7x:2x2x1
jax: 0.10.0
libtpu: 0.0.40
codegen_flags: <defaults>
</compile_context>

<pallas_src>
import functools

import jax
import jax.numpy as jnp
from jax.experimental import pallas as pl
from jax.experimental.pallas import tpu as pltpu

_NEG = -1e30  # effectively -inf for masked softmax logits (finite => no NaNs)


def _round_up(x, m):
    return (x + m - 1) // m * m


def _tpu_vmem_budget():
    """(physical VMEM bytes, usable budget) for the current TPU generation."""
    try:
        cap = int(pltpu.get_tpu_info().vmem_capacity_bytes)
    except Exception:
        cap = 64 << 20  # conservative (v7x-sized) fallback, safe everywhere
    budget = min((cap * 3) // 4, cap - (8 << 20))
    return cap, max(budget, 16 << 20)


# ----------------------------------------------------------------------------
# Fast path: whole (C, L) slab resident in VMEM, grid = (N,).
# ----------------------------------------------------------------------------
def _ctx_agg_resident_kernel(x_ref, ws_ref, wm_ref, bm_ref, ba_ref, o_ref,
                             *, ci_pad, a_row, k_row):
    x = x_ref[0]                                                   # (C, L) f32
    # One fused MXU pass gives v, a-logit and k-logit.
    proj = jnp.dot(ws_ref[...], x.astype(jnp.bfloat16),
                   preferred_element_type=jnp.float32)             # (R, L)
    v = proj[0:ci_pad]                                             # (ci_pad, L)
    a_logit = proj[a_row:a_row + 1] + ba_ref[...]                  # (1, L)
    k_logit = proj[k_row:k_row + 1]                                # (1, L)
    m = jnp.max(k_logit, axis=-1, keepdims=True)
    p = jnp.exp(k_logit - m)                                       # (1, L)
    z = jnp.sum(p, axis=-1, keepdims=True)
    # VPU multiply + XLU lane-reduce; the kernel is HBM-bound so the MXU/VALU
    # slack makes this free.  (Exact divide: runs once per image.)
    y0 = jnp.sum(v * p, axis=-1, keepdims=True) / z                # (ci_pad, 1)
    y1 = (jnp.dot(wm_ref[...], y0, preferred_element_type=jnp.float32)
          + bm_ref[...])                                           # (C, 1)
    o_ref[0] = x + y1 * jax.nn.sigmoid(a_logit)


# ----------------------------------------------------------------------------
# Tiled path: grid = (N, phase, L-tile).  phase 0 = online-softmax reduce,
# phase 1 = apply.
# ----------------------------------------------------------------------------
def _ctx_agg_tiled_kernel(x_ref, ws_ref, wa8_ref, wm_ref, bm_ref, ba_ref, o_ref,
                          m_scr, z_scr, y0_scr, y1_scr, a_scr,
                          *, ci_pad, a_row, k_row, seq_len, tile_l, stash_a):
    phase = pl.program_id(1)
    t = pl.program_id(2)
    ragged = (seq_len % tile_l) != 0  # python bool: last tile partially valid

    @pl.when((phase == 0) & (t == 0))
    def _init():
        m_scr[...] = jnp.full_like(m_scr, _NEG)
        z_scr[...] = jnp.zeros_like(z_scr)
        y0_scr[...] = jnp.zeros_like(y0_scr)

    @pl.when(phase == 0)
    def _reduce():
        xb = x_ref[0].astype(jnp.bfloat16)                         # (C, TL)
        proj = jnp.dot(ws_ref[...], xb,
                       preferred_element_type=jnp.float32)         # (R, TL)
        v = proj[0:ci_pad]                                         # (ci_pad, TL)
        k_logit = proj[k_row:k_row + 1]                            # (1, TL)
        if ragged:
            # Tail lanes of the last tile are undefined (possibly NaN): mask
            # both the logits and v (NaN * 0 == NaN would poison y0).
            lane = jax.lax.broadcasted_iota(jnp.int32, (1, tile_l), 1)
            valid = (t * tile_l + lane) < seq_len
            k_logit = jnp.where(valid, k_logit, _NEG)
            v = jnp.where(valid, v, 0.0)
        if stash_a:
            # Stash the a-logit so phase 1 does not recompute it.
            a_scr[t] = proj[a_row:a_row + 1]
        m_prev = m_scr[...]
        m_new = jnp.maximum(m_prev, jnp.max(k_logit, axis=-1, keepdims=True))
        alpha = jnp.exp(m_prev - m_new)                            # (1, 1)
        p = jnp.exp(k_logit - m_new)                               # (1, TL)
        z_scr[...] = alpha * z_scr[...] + jnp.sum(p, axis=-1, keepdims=True)
        # VPU multiply + XLU lane-reduce; move to the MXU (dot over L) only if
        # a bundle dump shows VALU as the binding slot.
        y0_scr[...] = alpha * y0_scr[...] + jnp.sum(v * p, axis=-1, keepdims=True)
        m_scr[...] = m_new

    @pl.when(phase == 1)
    def _apply():
        @pl.when(t == 0)
        def _finalize():
            y0 = y0_scr[...] / z_scr[...]          # exact divide, once/image
            y1_scr[...] = (jnp.dot(wm_ref[...], y0,
                                   preferred_element_type=jnp.float32)
                           + bm_ref[...])          # (C, 1)

        x = x_ref[0]                                               # (C, TL) f32
        if stash_a:
            a_logit = a_scr[t] + ba_ref[...]                       # (1, TL)
        else:
            # Fallback (huge L): recompute the gate with an f32 matvec so no
            # second full-tile bf16 cast is needed.
            a_logit = (jnp.dot(wa8_ref[...], x,
                               preferred_element_type=jnp.float32)[0:1]
                       + ba_ref[...])
        o_ref[0] = x + y1_scr[...] * jax.nn.sigmoid(a_logit)


# ----------------------------------------------------------------------------
# Wrapper
# ----------------------------------------------------------------------------
def context_aggregation(x_nchw, params, *, tile_l=None, stash_a=None):
    """Pallas TPU forward for ContextAggregation.

    x_nchw: (N, C, H, W) float32.  params: dict of 1x1-conv weights/biases
    (see make_params).  tile_l: force the tiled path with this L-tile width
    (rounded to 128).  stash_a: override the a-logit stashing heuristic.
    """
    N, C, H, W = x_nchw.shape
    L = H * W
    Ci = params["wv"].shape[0]
    itemsz = 4

    x = x_nchw.reshape(N, C, L).astype(jnp.float32)
    # (C kept unpadded: block dim == full array dim is always legal.)

    # --- weight prep (tiny, once in XLA) ------------------------------------
    ci_pad = _round_up(Ci, 8)
    if ci_pad - Ci >= 2:
        # Pack the a/k rows into the existing Ci -> ci_pad padding rows.
        a_row, k_row, R = Ci, Ci + 1, ci_pad
    else:
        a_row, k_row, R = ci_pad, ci_pad + 1, ci_pad + 8

    wa = params["wa"].reshape(C).astype(jnp.float32)
    wk = params["wk"].reshape(C).astype(jnp.float32)
    wv = params["wv"].reshape(Ci, C).astype(jnp.float32)
    wm = params["wm"].reshape(C, Ci).astype(jnp.float32)

    # Stacked projection: rows [0,Ci)=wv, row a_row=wa, row k_row=wk, rest 0.
    # (Extra y0 rows produced by the packed a/k rows are killed by the zero
    #  columns of wm_p, so packing is semantics-preserving.)
    ws = (jnp.zeros((R, C), jnp.float32)
          .at[:Ci].set(wv).at[a_row].set(wa).at[k_row].set(wk)
          .astype(jnp.bfloat16))
    wa8 = jnp.zeros((8, C), jnp.float32).at[0].set(wa)   # f32 gate row (fallback)
    wm_p = jnp.zeros((C, ci_pad), jnp.float32).at[:, :Ci].set(wm)
    # Fold v bias into the m bias (sum(softmax)=1); drop the k bias entirely
    # (softmax shift invariance).
    bm_eff = (wm @ params["bv"].reshape(Ci).astype(jnp.float32)
              + params["bm"].reshape(C).astype(jnp.float32)).reshape(C, 1)
    ba = params["ba"].reshape(1, 1).astype(jnp.float32)

    vmem_cap, budget = _tpu_vmem_budget()
    flops = 2 * N * L * C * R + 2 * N * C * ci_pad
    transc = 2 * N * L

    # --- fast resident path: whole slab in VMEM, 2 HBM passes over x --------
    # Rough peak: double-buffered in/out slabs + proj / v*p f32 temporaries.
    fast_est = (4 * C + R + ci_pad + 16) * L * itemsz + (2 << 20)
    if tile_l is None and fast_est <= budget:
        vmem_limit = int(min(vmem_cap - (4 << 20),
                             max(fast_est + (4 << 20), 32 << 20)))
        kern = functools.partial(_ctx_agg_resident_kernel,
                                 ci_pad=ci_pad, a_row=a_row, k_row=k_row)
        full = lambda shp: pl.BlockSpec(shp, lambda n: (0,) * len(shp))
        out = pl.pallas_call(
            kern,
            out_shape=jax.ShapeDtypeStruct((N, C, L), jnp.float32),
            grid_spec=pltpu.PrefetchScalarGridSpec(
                num_scalar_prefetch=0,
                grid=(N,),
                in_specs=[
                    pl.BlockSpec((1, C, L), lambda n: (n, 0, 0)),
                    full((R, C)), full((C, ci_pad)), full((C, 1)), full((1, 1)),
                ],
                out_specs=pl.BlockSpec((1, C, L), lambda n: (n, 0, 0)),
            ),
            compiler_params=pltpu.CompilerParams(
                dimension_semantics=("parallel",),
                vmem_limit_bytes=vmem_limit),
            cost_estimate=pl.CostEstimate(
                flops=flops, transcendentals=transc,
                bytes_accessed=2 * N * C * L * itemsz),
        )(x, ws, wm_p, bm_eff, ba)
        return out.reshape(N, C, H, W)

    # --- tiled two-phase path ------------------------------------------------
    # a-logit stash: (num_tiles, 1, tile_l) f32, sublane-padded to 8 rows.
    stash_est = 8 * itemsz * _round_up(L, 128)
    if stash_a is None:
        stash_a = stash_est <= budget // 4   # true for any realistic map

    if tile_l is None:
        avail = max(budget - (4 << 20) - (stash_est if stash_a else 0), 8 << 20)
        # bytes per lane of tile_l: 2 in + 2 out f32 blocks, proj (R rows),
        # v / v*p temporaries (2*ci_pad rows), misc headroom.
        per_lane = (4 * C + R + 2 * ci_pad + 16) * itemsz
        tile_l = int(max(512, min(8192, avail // per_lane)))
        tile_l = max(128, (tile_l // 128) * 128)
        # Prefer a 128-multiple divisor of L (no ragged tail) if it does not
        # shrink the tile by more than 2x.
        if L % 128 == 0 and L % tile_l != 0:
            d = tile_l
            while d >= max(128, tile_l // 2):
                if L % d == 0:
                    tile_l = d
                    break
                d -= 128
    tile_l = max(128, _round_up(int(tile_l), 128))
    tile_l = min(tile_l, _round_up(L, 128))
    num_tiles = (L + tile_l - 1) // tile_l

    a_scr_shape = (num_tiles, 1, tile_l) if stash_a else (1, 1, 128)
    stash_bytes = (num_tiles * 8 * tile_l * itemsz) if stash_a else (8 * 128 * itemsz)
    per_lane = (4 * C + R + 2 * ci_pad + 16) * itemsz
    est = per_lane * tile_l + stash_bytes + (2 << 20)
    vmem_limit = int(min(vmem_cap - (4 << 20), max(est + (4 << 20), 32 << 20)))

    kern = functools.partial(_ctx_agg_tiled_kernel, ci_pad=ci_pad, a_row=a_row,
                             k_row=k_row, seq_len=L, tile_l=tile_l,
                             stash_a=stash_a)
    full = lambda shp: pl.BlockSpec(shp, lambda n, p, t: (0,) * len(shp))
    x_spec = pl.BlockSpec((1, C, tile_l), lambda n, p, t: (n, 0, t))
    # Output blocks are only written in phase 1; during phase 0 the index map
    # pins block 0 (t*p == 0), which is fully overwritten at (phase=1, t=0)
    # before its first flush, so no garbage is ever written back to HBM.
    out_spec = pl.BlockSpec((1, C, tile_l), lambda n, p, t: (n, 0, t * p))

    out = pl.pallas_call(
        kern,
        out_shape=jax.ShapeDtypeStruct((N, C, L), jnp.float32),
        grid_spec=pltpu.PrefetchScalarGridSpec(
            num_scalar_prefetch=0,
            grid=(N, 2, num_tiles),
            in_specs=[
                x_spec,                  # x tile
                full((R, C)),            # stacked v/a/k weight (bf16)
                full((8, C)),            # f32 gate row (no-stash fallback)
                full((C, ci_pad)),       # m weight (zero-padded columns)
                full((C, 1)),            # effective m bias (bv folded in)
                full((1, 1)),            # a bias
            ],
            out_specs=out_spec,
            scratch_shapes=[
                pltpu.VMEM((1, 1), jnp.float32),        # running max
                pltpu.VMEM((1, 1), jnp.float32),        # running Z
                pltpu.VMEM((ci_pad, 1), jnp.float32),   # unnormalized pooled v
                pltpu.VMEM((C, 1), jnp.float32),        # y1 = m(...)
                pltpu.VMEM(a_scr_shape, jnp.float32),   # per-tile a-logit stash
            ],
        ),
        compiler_params=pltpu.CompilerParams(
            # Batch axis is parallel (megacore); phase/L-tile axes carry the
            # online-softmax state -> arbitrary.
            # TODO(synk): for N < num TensorCores (v7x), split the L-tile range
            # across cores and combine (m, Z, y0) via shared memory.
            dimension_semantics=("parallel", "arbitrary", "arbitrary"),
            vmem_limit_bytes=vmem_limit),
        cost_estimate=pl.CostEstimate(
            flops=flops, transcendentals=transc,
            bytes_accessed=3 * N * C * L * itemsz),
    )(x, ws, wa8, wm_p, bm_eff, ba)
    return out.reshape(N, C, H, W)


# ----------------------------------------------------------------------------
# Pure-JAX reference and parameter construction
# ----------------------------------------------------------------------------
def context_aggregation_ref(x_nchw, params):
    """Pure-JAX reference mirroring the PyTorch forward (f32 throughout)."""
    N, C, H, W = x_nchw.shape
    L = H * W
    x = x_nchw.reshape(N, C, L)

    a = jax.nn.sigmoid(
        jnp.einsum("c,ncl->nl", params["wa"], x) + params["ba"])         # (N, L)
    k_logit = jnp.einsum("c,ncl->nl", params["wk"], x) + params["bk"]    # (N, L)
    k = jax.nn.softmax(k_logit, axis=-1)                                 # (N, L)
    v = jnp.einsum("ic,ncl->nil", params["wv"], x) + params["bv"][None, :, None]
    y0 = jnp.einsum("nil,nl->ni", v, k)                                  # (N, Ci)
    y1 = jnp.einsum("ci,ni->nc", params["wm"], y0) + params["bm"][None]  # (N, C)
    y = y1[:, :, None] * a[:, None, :]                                   # (N, C, L)
    return (x + y).reshape(N, C, H, W)


def make_params(key, in_channels, reduction=1):
    C = in_channels
    Ci = max(C // reduction, 1)
    ks = jax.random.split(key, 8)
    # NOTE: the original init sets conv_m to zero (output == x). We instead
    # use small deterministic random weights so the full compute path is
    # exercised; shapes match the module exactly.
    scale = 0.1
    return {
        "wa": scale * jax.random.normal(ks[0], (C,), jnp.float32),
        "ba": scale * jax.random.normal(ks[1], (), jnp.float32),
        "wk": scale * jax.random.normal(ks[2], (C,), jnp.float32),
        "bk": scale * jax.random.normal(ks[3], (), jnp.float32),
        "wv": scale * jax.random.normal(ks[4], (Ci, C), jnp.float32),
        "bv": scale * jax.random.normal(ks[5], (Ci,), jnp.float32),
        "wm": scale * jax.random.normal(ks[6], (C, Ci), jnp.float32),
        "bm": scale * jax.random.normal(ks[7], (C,), jnp.float32),
    }


def _check(out, ref, tag):
    err = jnp.max(jnp.abs(out - ref))
    assert out.shape == ref.shape, f"{tag}: shape {out.shape} vs {ref.shape}"
    assert jnp.allclose(out, ref, atol=2e-2, rtol=2e-2), f"{tag}: max abs err {err}"


if __name__ == "__main__":
    key = jax.random.PRNGKey(0)
    kx1, kp1, kx2, kp2, kx3, kp3, kx4, kp4 = jax.random.split(key, 8)

    # 1) Fast resident path (default): N=2, C=4, 16x16 (packed a/k rows, R=8).
    N, C, H, W = 2, 4, 16, 16
    x1 = jax.random.normal(kx1, (N, C, H, W), jnp.float32)
    p1 = make_params(kp1, in_channels=C, reduction=1)
    out1 = jax.block_until_ready(context_aggregation(x1, p1))
    _check(out1, context_aggregation_ref(x1, p1), "fast")

    # 2) Tiled two-phase path, exact tiles, unpacked rows (Ci=8 -> R=16),
    #    a-logit stash on: tile_l=128 over L=256 -> 2 L tiles.
    N2, C2, H2, W2 = 2, 8, 16, 16
    x2 = jax.random.normal(kx2, (N2, C2, H2, W2), jnp.float32)
    p2 = make_params(kp2, in_channels=C2, reduction=1)
    out2 = jax.block_until_ready(context_aggregation(x2, p2, tile_l=128))
    _check(out2, context_aggregation_ref(x2, p2), "tiled-exact")

    # 3) Tiled path with a ragged last tile (17x17=289 -> tiles 128/128/33),
    #    channel reduction (Ci=3 packed into ci_pad=8), no-stash fallback.
    N3, C3, H3, W3 = 2, 6, 17, 17
    x3 = jax.random.normal(kx3, (N3, C3, H3, W3), jnp.float32)
    p3 = make_params(kp3, in_channels=C3, reduction=2)
    ref3 = context_aggregation_ref(x3, p3)
    out3 = jax.block_until_ready(
        context_aggregation(x3, p3, tile_l=128, stash_a=False))
    _check(out3, ref3, "tiled-ragged-nostash")
    # 3b) Same input with the a-logit stash (default) to cover stash + ragged.
    out3b = jax.block_until_ready(context_aggregation(x3, p3, tile_l=128))
    _check(out3b, ref3, "tiled-ragged-stash")

    # 4) Fast path with a non-128-multiple L (9x9=81) and channel reduction.
    N4, C4, H4, W4 = 1, 6, 9, 9
    x4 = jax.random.normal(kx4, (N4, C4, H4, W4), jnp.float32)
    p4 = make_params(kp4, in_channels=C4, reduction=2)
    out4 = jax.block_until_ready(context_aggregation(x4, p4))
    _check(out4, context_aggregation_ref(x4, p4), "fast-ragged")

    print("KERNEL_OK")
</pallas_src>

<mosaic_0001>
module attributes {stable_mosaic.version = 11 : i64} {
  func.func @_ctx_agg_resident_kernel(%arg0: i32, %arg1: memref<1x4x256xf32, #tpu.memory_space<vmem>>, %arg2: memref<8x4xbf16, #tpu.memory_space<vmem>>, %arg3: memref<4x8xf32, #tpu.memory_space<vmem>>, %arg4: memref<4x1xf32, #tpu.memory_space<vmem>>, %arg5: memref<1x1xf32, #tpu.memory_space<vmem>>, %arg6: memref<1x4x256xf32, #tpu.memory_space<vmem>>) attributes {dimension_semantics = [#tpu.dimension_semantics<parallel>], iteration_bounds = array<i64: 2>, scalar_prefetch = 0 : i64, scratch_operands = 0 : i64, tpu.core_type = #tpu.core_type<tc>, window_params = [{transform_indices = @transform_0, window_bounds = array<i64: 1, 4, 256>}, {pipeline_mode = #tpu.pipeline_mode<synchronous>, transform_indices = @transform_1, window_bounds = array<i64: 8, 4>}, {pipeline_mode = #tpu.pipeline_mode<synchronous>, transform_indices = @transform_2, window_bounds = array<i64: 4, 8>}, {pipeline_mode = #tpu.pipeline_mode<synchronous>, transform_indices = @transform_3, window_bounds = array<i64: 4, 1>}, {pipeline_mode = #tpu.pipeline_mode<synchronous>, transform_indices = @transform_4, window_bounds = array<i64: 1, 1>}, {transform_indices = @transform_5, window_bounds = array<i64: 1, 4, 256>}]} {
    %c0 = arith.constant 0 : index
    %c0_0 = arith.constant 0 : index
    %c0_1 = arith.constant 0 : index
    %0 = vector.load %arg1[%c0, %c0_0, %c0_1] : memref<1x4x256xf32, #tpu.memory_space<vmem>>, vector<1x4x256xf32>
    %1 = vector.shape_cast %0 : vector<1x4x256xf32> to vector<4x256xf32>
    %c0_2 = arith.constant 0 : index
    %c0_3 = arith.constant 0 : index
    %2 = vector.load %arg2[%c0_2, %c0_3] : memref<8x4xbf16, #tpu.memory_space<vmem>>, vector<8x4xbf16>
    %3 = arith.truncf %1 : vector<4x256xf32> to vector<4x256xbf16>
    %cst = arith.constant dense<0.000000e+00> : vector<8x256xf32>
    %4 = tpu.matmul %2, %3, %cst {dimension_numbers = #tpu.dot_dimension_numbers<[1], [0], [0], [1], [0, 0, 1, 1], [], []>} : vector<8x4xbf16>, vector<4x256xbf16>, vector<8x256xf32> -> vector<8x256xf32>
    %5 = vector.extract_strided_slice %4 {offsets = [4, 0], sizes = [1, 256], strides = [1, 1]} : vector<8x256xf32> to vector<1x256xf32>
    %c0_4 = arith.constant 0 : index
    %c0_5 = arith.constant 0 : index
    %6 = vector.load %arg5[%c0_4, %c0_5] : memref<1x1xf32, #tpu.memory_space<vmem>>, vector<1x1xf32>
    %7 = vector.broadcast %6 : vector<1x1xf32> to vector<1x256xf32>
    %8 = arith.addf %5, %7 : vector<1x256xf32>
    %9 = vector.extract_strided_slice %4 {offsets = [5, 0], sizes = [1, 256], strides = [1, 1]} : vector<8x256xf32> to vector<1x256xf32>
    %cst_6 = arith.constant dense<0xFF800000> : vector<1xf32>
    %10 = vector.multi_reduction <maximumf>, %9, %cst_6 [1] : vector<1x256xf32> to vector<1xf32>
    %11 = vector.shape_cast %10 : vector<1xf32> to vector<1x1xf32>
    %12 = vector.broadcast %11 : vector<1x1xf32> to vector<1x256xf32>
    %13 = arith.subf %9, %12 : vector<1x256xf32>
    %14 = math.exp %13 : vector<1x256xf32>
    %cst_7 = arith.constant dense<0.000000e+00> : vector<1xf32>
    %15 = vector.multi_reduction <add>, %14, %cst_7 [1] : vector<1x256xf32> to vector<1xf32>
    %16 = vector.shape_cast %15 : vector<1xf32> to vector<1x1xf32>
    %17 = vector.broadcast %14 : vector<1x256xf32> to vector<8x256xf32>
    %18 = arith.mulf %4, %17 : vector<8x256xf32>
    %cst_8 = arith.constant dense<0.000000e+00> : vector<8xf32>
    %19 = vector.multi_reduction <add>, %18, %cst_8 [1] : vector<8x256xf32> to vector<8xf32>
    %20 = vector.shape_cast %19 : vector<8xf32> to vector<8x1xf32>
    %21 = vector.broadcast %16 : vector<1x1xf32> to vector<8x1xf32>
    %22 = arith.divf %20, %21 : vector<8x1xf32>
    %c0_9 = arith.constant 0 : index
    %c0_10 = arith.constant 0 : index
    %23 = vector.load %arg3[%c0_9, %c0_10] : memref<4x8xf32, #tpu.memory_space<vmem>>, vector<4x8xf32>
    %cst_11 = arith.constant dense<0.000000e+00> : vector<4x1xf32>
    %24 = tpu.matmul %23, %22, %cst_11 {dimension_numbers = #tpu.dot_dimension_numbers<[1], [0], [0], [1], [0, 0, 1, 1], [], []>} : vector<4x8xf32>, vector<8x1xf32>, vector<4x1xf32> -> vector<4x1xf32>
    %c0_12 = arith.constant 0 : index
    %c0_13 = arith.constant 0 : index
    %25 = vector.load %arg4[%c0_12, %c0_13] : memref<4x1xf32, #tpu.memory_space<vmem>>, vector<4x1xf32>
    %26 = arith.addf %24, %25 : vector<4x1xf32>
    %27 = arith.negf %8 : vector<1x256xf32>
    %28 = math.exp %27 : vector<1x256xf32>
    %cst_14 = arith.constant 1.000000e+00 : f32
    %29 = vector.broadcast %cst_14 : f32 to vector<1x256xf32>
    %30 = arith.addf %29, %28 : vector<1x256xf32>
    %31 = arith.divf %29, %30 : vector<1x256xf32>
    %32 = vector.broadcast %26 : vector<4x1xf32> to vector<4x256xf32>
    %33 = vector.broadcast %31 : vector<1x256xf32> to vector<4x256xf32>
    %34 = arith.mulf %32, %33 : vector<4x256xf32>
    %35 = arith.addf %1, %34 : vector<4x256xf32>
    %c0_15 = arith.constant 0 : index
    %c0_16 = arith.constant 0 : index
    %c0_17 = arith.constant 0 : index
    %36 = vector.load %arg6[%c0_15, %c0_16, %c0_17] : memref<1x4x256xf32, #tpu.memory_space<vmem>>, vector<1x4x256xf32>
    %37 = vector.shape_cast %36 : vector<1x4x256xf32> to vector<4x256xf32>
    %38 = vector.shape_cast %35 : vector<4x256xf32> to vector<1x4x256xf32>
    tpu.vector_store %arg6[%c0_15, %c0_16, %c0_17], %38 {strides = array<i32>} : memref<1x4x256xf32, #tpu.memory_space<vmem>>, vector<1x4x256xf32>,
    return
  }
  func.func @transform_0(%arg0: i32) -> (i32, i32, i32) {
    %c0_i32 = arith.constant 0 : i32
    %c0_i32_0 = arith.constant 0 : i32
    %c0_i32_1 = arith.constant 0 : i32
    return %arg0, %c0_i32, %c0_i32_0 : i32, i32, i32
  }
  func.func @transform_1(%arg0: i32) -> (i32, i32) {
    %c0_i32 = arith.constant 0 : i32
    %c0_i32_0 = arith.constant 0 : i32
    %c0_i32_1 = arith.constant 0 : i32
    return %c0_i32, %c0_i32_0 : i32, i32
  }
  func.func @transform_2(%arg0: i32) -> (i32, i32) {
    %c0_i32 = arith.constant 0 : i32
    %c0_i32_0 = arith.constant 0 : i32
    %c0_i32_1 = arith.constant 0 : i32
    return %c0_i32, %c0_i32_0 : i32, i32
  }
  func.func @transform_3(%arg0: i32) -> (i32, i32) {
    %c0_i32 = arith.constant 0 : i32
    %c0_i32_0 = arith.constant 0 : i32
    %c0_i32_1 = arith.constant 0 : i32
    return %c0_i32, %c0_i32_0 : i32, i32
  }
  func.func @transform_4(%arg0: i32) -> (i32, i32) {
    %c0_i32 = arith.constant 0 : i32
    %c0_i32_0 = arith.constant 0 : i32
    %c0_i32_1 = arith.constant 0 : i32
    return %c0_i32, %c0_i32_0 : i32, i32
  }
  func.func @transform_5(%arg0: i32) -> (i32, i32, i32) {
    %c0_i32 = arith.constant 0 : i32
    %c0_i32_0 = arith.constant 0 : i32
    %c0_i32_1 = arith.constant 0 : i32
    return %arg0, %c0_i32, %c0_i32_0 : i32, i32, i32
  }
}

</mosaic_0001>

<llo_original>
// kernel: tpu_custom_call.1
$region0: #{tpu_custom_call.1}
  #allocation0 [shape = 'u32[]', space=smem, size = 0x4, offset = 0x4, fixed_abs, tag = 'smem constant byte address 0x4 - core index']
  #allocation1 [shape = 'u32[144,128]{1,0:T(1,128)}', space=vmem, size = 0x12000, scoped, tag = 'internal scratch']
  #allocation2 [shape = 'f32[1,1]{1,0:T(1,128)S(1)}', space=vmem, size = 0x200, scoped, tag = 'scoped memory for tpu_custom_call.1']
  %s0 = inlined_call_operand.hbm [shape: f32[2,4,256], index: 0, kind: input, shape index: {}]
  %s1 = inlined_call_operand.vmem [shape: bf16[8,4], index: 1, kind: input, shape index: {}]
  %s2 = inlined_call_operand.vmem [shape: f32[4,8], index: 2, kind: input, shape index: {}]
  %s3 = inlined_call_operand.vmem [shape: f32[4,1], index: 3, kind: input, shape index: {}]
  %s4 = inlined_call_operand.<no memory space> [shape: f32[1,1], index: 4, kind: input, shape index: {}]
  %s5 = inlined_call_operand.hbm [shape: f32[2,4,256], index: 5, kind: output, shape index: {}]
  %s6 = sld [smem:[#allocation0]]
  $region57: #{tpu_custom_call.1} parent=0
    _
  %s8 = ssub.s32 1, %s6
  %s9 = scalar_select 0, %s8, %s6
  %v10 = vstv %s4
  %11 = vst [vmem:[#allocation2] sm:$0x1] %v10
  $region1: #{tpu_custom_call.1} parent=0
    #allocation3 [shape = 'u8[8192]{0}', space=vmem, size = 0x2000, scoped, tag = 'input window, operand 0']
    #allocation4 [shape = 's32[2]{0}', space=sflag, size = 0x8, scoped, tag = 'scoped memory for tpu_custom_call.1']
    #allocation5 [shape = 's32[2]{0}', space=sflag, size = 0x8, scoped, tag = 'scoped memory for tpu_custom_call.1']
    #allocation6 [shape = 'u8[8192]{0}', space=vmem, size = 0x2000, scoped, tag = 'output window, operand 0']
    %12 = vsyncpa [#allocation4], 0
    %s13 = scalar_lea.sflag [#allocation4], 1
    %14 = vsyncpa %s13, 0
    %15 = vsyncpa [#allocation5], 0
    %s16 = scalar_lea.sflag [#allocation5], 1
    %17 = vsyncpa %s16, 0
    loop: start=0, step=1, limit=4
    $region2: #{tpu_custom_call.1} parent=1 // loop_pre_header
      _
    $region3: #{tpu_custom_call.1} parent=1 // loop_header
      %s19 = sphi 0, %s23
      %p20 = scmp.ge.s32.totalorder %s19, 4
      %s29 = sphi 0, %s31
      %s32 = sphi 0, %s29
      %s33 = sphi 0, %s32
      %s49 = sphi 0, %s33
      %s53 = sphi 0, %s53
      %s55 = sphi 0, %s53
      %s56 = sphi 0, %s55
      %s70 = sphi 0, %s56
      %s74 = sphi 0, %s74
      %s76 = sphi 0, %s74
      %s77 = sphi 0, %s76
      %s91 = sphi 0, %s77
      %s95 = sphi 0, %s95
      %s97 = sphi 0, %s95
      %s98 = sphi 0, %s97
      %s112 = sphi 0, %s98
      %s116 = sphi 0, %s116
      %s118 = sphi 0, %s116
      %s119 = sphi 0, %s118
      %s133 = sphi 0, %s119
      %s139 = sphi 0, %s141
      %s142 = sphi 0, %s139
      %s143 = sphi 0, %s142
      %s159 = sphi 0, %s143
    $region4: #{tpu_custom_call.1} parent=1 // loop_header_branch
      %22 = sbr.rel (%p20) target = $region8
    $region5: #{tpu_custom_call.1} parent=1 // loop_body
      %s24 = ssub.s32 %s19, 1
      %s25 = ssub.s32 %s19, 2
      %s26 = sadd.s32 %s19, 1
      %s27 = ssub.s32 %s19, %s26
      %p28 = scmp.eq.s32.totalorder %s27, 0
      %s30 = sadd.s32 %s29, 1
      %s31 = scalar_select %p28, %s29, %s30
      %p34 = pneg %p28
      %p35 = scmp.eq.s32.totalorder %s19, 1
      %p36 = por %p34, %p35
      %p37 = scmp.ne.s32.totalorder %s29, %s32
      %p38 = scmp.eq.s32.totalorder %s19, 0
      %p39 = por %p37, %p38
      %p40 = scmp.ne.s32.totalorder %s29, %s32
      %p41 = scmp.eq.s32.totalorder %s24, 1
      %p42 = por %p40, %p41
      %p43 = scmp.ne.s32.totalorder %s32, %s33
      %p44 = scmp.eq.s32.totalorder %s24, 0
      %p45 = por %p43, %p44
      %p46 = scmp.ne.s32.totalorder %s32, %s33
      %p47 = scmp.eq.s32.totalorder %s25, 1
      %p48 = por %p46, %p47
      %p50 = scmp.ne.s32.totalorder %s33, %s49
      %p51 = scmp.eq.s32.totalorder %s25, 0
      %p52 = por %p50, %p51
      %s54 = sadd.s32 %s53, 1
      %p57 = scmp.eq.s32.totalorder %s19, 1
      %p58 = scmp.ne.s32.totalorder %s53, %s55
      %p59 = scmp.eq.s32.totalorder %s19, 0
      %p60 = por %p58, %p59
      %p61 = scmp.ne.s32.totalorder %s53, %s55
      %p62 = scmp.eq.s32.totalorder %s24, 1
      %p63 = por %p61, %p62
      %p64 = scmp.ne.s32.totalorder %s55, %s56
      %p65 = scmp.eq.s32.totalorder %s24, 0
      %p66 = por %p64, %p65
      %p67 = scmp.ne.s32.totalorder %s55, %s56
      %p68 = scmp.eq.s32.totalorder %s25, 1
      %p69 = por %p67, %p68
      %p71 = scmp.ne.s32.totalorder %s56, %s70
      %p72 = scmp.eq.s32.totalorder %s25, 0
      %p73 = por %p71, %p72
      %s75 = sadd.s32 %s74, 1
      %p78 = scmp.eq.s32.totalorder %s19, 1
      %p79 = scmp.ne.s32.totalorder %s74, %s76
      %p80 = scmp.eq.s32.totalorder %s19, 0
      %p81 = por %p79, %p80
      %p82 = scmp.ne.s32.totalorder %s74, %s76
      %p83 = scmp.eq.s32.totalorder %s24, 1
      %p84 = por %p82, %p83
      %p85 = scmp.ne.s32.totalorder %s76, %s77
      %p86 = scmp.eq.s32.totalorder %s24, 0
      %p87 = por %p85, %p86
      %p88 = scmp.ne.s32.totalorder %s76, %s77
      %p89 = scmp.eq.s32.totalorder %s25, 1
      %p90 = por %p88, %p89
      %p92 = scmp.ne.s32.totalorder %s77, %s91
      %p93 = scmp.eq.s32.totalorder %s25, 0
      %p94 = por %p92, %p93
      %s96 = sadd.s32 %s95, 1
      %p99 = scmp.eq.s32.totalorder %s19, 1
      %p100 = scmp.ne.s32.totalorder %s95, %s97
      %p101 = scmp.eq.s32.totalorder %s19, 0
      %p102 = por %p100, %p101
      %p103 = scmp.ne.s32.totalorder %s95, %s97
      %p104 = scmp.eq.s32.totalorder %s24, 1
      %p105 = por %p103, %p104
      %p106 = scmp.ne.s32.totalorder %s97, %s98
      %p107 = scmp.eq.s32.totalorder %s24, 0
      %p108 = por %p106, %p107
      %p109 = scmp.ne.s32.totalorder %s97, %s98
      %p110 = scmp.eq.s32.totalorder %s25, 1
      %p111 = por %p109, %p110
      %p113 = scmp.ne.s32.totalorder %s98, %s112
      %p114 = scmp.eq.s32.totalorder %s25, 0
      %p115 = por %p113, %p114
      %s117 = sadd.s32 %s116, 1
      %p120 = scmp.eq.s32.totalorder %s19, 1
      %p121 = scmp.ne.s32.totalorder %s116, %s118
      %p122 = scmp.eq.s32.totalorder %s19, 0
      %p123 = por %p121, %p122
      %p124 = scmp.ne.s32.totalorder %s116, %s118
      %p125 = scmp.eq.s32.totalorder %s24, 1
      %p126 = por %p124, %p125
      %p127 = scmp.ne.s32.totalorder %s118, %s119
      %p128 = scmp.eq.s32.totalorder %s24, 0
      %p129 = por %p127, %p128
      %p130 = scmp.ne.s32.totalorder %s118, %s119
      %p131 = scmp.eq.s32.totalorder %s25, 1
      %p132 = por %p130, %p131
      %p134 = scmp.ne.s32.totalorder %s119, %s133
      %p135 = scmp.eq.s32.totalorder %s25, 0
      %p136 = por %p134, %p135
      %s137 = ssub.s32 %s19, %s26
      %p138 = scmp.eq.s32.totalorder %s137, 0
      %s140 = sadd.s32 %s139, 1
      %s141 = scalar_select %p138, %s139, %s140
      %p144 = pneg %p138
      %p145 = scmp.eq.s32.totalorder %s19, 1
      %p146 = por %p144, %p145
      %p147 = scmp.ne.s32.totalorder %s139, %s142
      %p148 = scmp.eq.s32.totalorder %s19, 0
      %p149 = por %p147, %p148
      %p150 = scmp.ne.s32.totalorder %s139, %s142
      %p151 = scmp.eq.s32.totalorder %s24, 1
      %p152 = por %p150, %p151
      %p153 = scmp.ne.s32.totalorder %s142, %s143
      %p154 = scmp.eq.s32.totalorder %s24, 0
      %p155 = por %p153, %p154
      %p156 = scmp.ne.s32.totalorder %s142, %s143
      %p157 = scmp.eq.s32.totalorder %s25, 1
      %p158 = por %p156, %p157
      %p160 = scmp.ne.s32.totalorder %s143, %s159
      %p161 = scmp.eq.s32.totalorder %s25, 0
      %p162 = por %p160, %p161
      %p163 = scmp.le.s32.totalorder 1, %s19
      %p164 = scmp.lt.s32.totalorder %s19, 3
      %p165 = pnand %p163, %p164
      %p166 = pneg %p165
      // Predicated region
      $region9: #{tpu_custom_call.1} parent=5 // pred_check
        _
      $region10: #{tpu_custom_call.1} parent=5 // pred_check_branch
        %168 = sbr.rel (%p165) target = $region12
      $region11: #{tpu_custom_call.1} parent=5 // pred_region
        %s169 = ssub.s32 %s19, 1
        // Predicated region
        $region13: #{tpu_custom_call.1} parent=11 // pred_check
          %p170 = pneg %p66
        $region14: #{tpu_custom_call.1} parent=11 // pred_check_branch
          %172 = sbr.rel (%p170) target = $region16
        $region15: #{tpu_custom_call.1} parent=11 // pred_region
          _
        $region16: #{tpu_custom_call.1} parent=11 // pred_fallthru
          _
        // Predicated region
        $region17: #{tpu_custom_call.1} parent=11 // pred_check
          %p173 = pneg %p87
        $region18: #{tpu_custom_call.1} parent=11 // pred_check_branch
          %175 = sbr.rel (%p173) target = $region20
        $region19: #{tpu_custom_call.1} parent=11 // pred_region
          _
        $region20: #{tpu_custom_call.1} parent=11 // pred_fallthru
          _
        // Predicated region
        $region21: #{tpu_custom_call.1} parent=11 // pred_check
          %p176 = pneg %p108
        $region22: #{tpu_custom_call.1} parent=11 // pred_check_branch
          %178 = sbr.rel (%p176) target = $region24
        $region23: #{tpu_custom_call.1} parent=11 // pred_region
          _
        $region24: #{tpu_custom_call.1} parent=11 // pred_fallthru
          _
        // Predicated region
        $region25: #{tpu_custom_call.1} parent=11 // pred_check
          %p179 = pneg %p129
        $region26: #{tpu_custom_call.1} parent=11 // pred_check_branch
          %181 = sbr.rel (%p179) target = $region28
        $region27: #{tpu_custom_call.1} parent=11 // pred_region
          _
        $region28: #{tpu_custom_call.1} parent=11 // pred_fallthru
          _
      $region12: #{tpu_custom_call.1} parent=5 // pred_fallthru
        _
      %p182 = scmp.lt.s32.totalorder %s19, 2
      // Predicated region
      $region29: #{tpu_custom_call.1} parent=5 // pred_check
        %p183 = pneg %p182
      $region30: #{tpu_custom_call.1} parent=5 // pred_check_branch
        %185 = sbr.rel (%p183) target = $region32
      $region31: #{tpu_custom_call.1} parent=5 // pred_region
        // Predicated region
        $region33: #{tpu_custom_call.1} parent=31 // pred_check
          %p186 = pneg %p39
        $region34: #{tpu_custom_call.1} parent=31 // pred_check_branch
          %188 = sbr.rel (%p186) target = $region36
        $region35: #{tpu_custom_call.1} parent=31 // pred_region
          %s189 = sand.u32 %s29, 1
          %s190 = scalar_lea.sflag [#allocation4], %s189
          %s191 = sand.u32 %s29, 1
          %s192 = smul.addr %s191, 8
          %s193 = scalar_lea.vmem [#allocation3], %s192
          %s195 = ssub.s32 128, 128
          %196 = vsyncadd %s190, %s195
          %s197 = smul.addr %s19, 2
          %s198 = smul.addr %s197, 64
          %s199 = scalar_lea.hbm %s0, %s198
          %s201 = sshll.u32 %s193, 4
          %s202 = int_to_ptr.vmem [resolvable:$true] %s201
          %204 = dma.hbm_to_vmem [thread:$0]  %s199, 128, %s202, %s190
        $region36: #{tpu_custom_call.1} parent=31 // pred_fallthru
          _
      $region32: #{tpu_custom_call.1} parent=5 // pred_fallthru
        _
      %p205 = scmp.le.s32.totalorder 1, %s19
      %p206 = scmp.lt.s32.totalorder %s19, 3
      %p207 = pnand %p205, %p206
      %p208 = pneg %p207
      // Predicated region
      $region37: #{tpu_custom_call.1} parent=5 // pred_check
        _
      $region38: #{tpu_custom_call.1} parent=5 // pred_check_branch
        %210 = sbr.rel (%p207) target = $region40
      $region39: #{tpu_custom_call.1} parent=5 // pred_region
        %s211 = ssub.s32 %s19, 1
        %s212 = sand.u32 %s32, 1
        %s213 = scalar_lea.sflag [#allocation4], %s212
        %s214 = sand.u32 %s32, 1
        %s215 = smul.addr %s214, 8
        %s216 = scalar_lea.vmem [#allocation3], %s215
        // Predicated region
        $region41: #{tpu_custom_call.1} parent=39 // pred_check
          %p217 = pneg %p45
        $region42: #{tpu_custom_call.1} parent=39 // pred_check_branch
          %219 = sbr.rel (%p217) target = $region44
        $region43: #{tpu_custom_call.1} parent=39 // pred_region
          %220 = dma.done %s213, 128
        $region44: #{tpu_custom_call.1} parent=39 // pred_fallthru
          _
        %s221 = sand.u32 %s32, 1
        %s222 = scalar_lea.sflag [#allocation4], %s221
        %s223 = sand.u32 %s32, 1
        %s224 = smul.addr %s223, 8
        %s225 = scalar_lea.vmem [#allocation3], %s224
        %p226 = pneg %p45
        %p227 = pneg %p42
        %p228 = pneg %p66
        %p229 = pneg %p63
        %p230 = pneg %p87
        %p231 = pneg %p84
        %p232 = pneg %p108
        %p233 = pneg %p105
        %p234 = pneg %p129
        %p235 = pneg %p126
        %p236 = pneg %p155
        %p237 = pneg %p152
        %s238 = sand.u32 %s142, 1
        %s239 = scalar_lea.sflag [#allocation5], %s238
        %s240 = sand.u32 %s142, 1
        %s241 = smul.addr %s240, 8
        %s242 = scalar_lea.vmem [#allocation6], %s241
        %v244 = vld [vmem:[%s216] sm:$0xff]
        %v245 = vld [vmem:[%s1] sm:$0xf]
        %v247 = vcombine.high %v244, %v244
        %v249 = vpack.c.bf16 %v244, %v244
        %v250 = vpack.c.bf16 %v247, %v247
        %vm251 = vcmask 31744
        %v253 = vsel %vm251, %v245, 0
        %vm255 = vcmask 1041408
        %v257 = vsel %vm255, %v249, 0
        %v260 = vsel %vm255, %v250, 0
        %262 = vmatprep.subr.bf16.mxu0 %v260
        %263 = vmatpush1.bf16.msra.mxu0 %v257
        %264 = vmatprep.subr.bf16.mxu0 0
        %265 = vmatpush1.bf16.msra.mxu0 0
        %266 = vmatprep.subr.bf16.mxu0 0
        %267 = vmatpush1.bf16.msra.mxu0 0
        %268 = vmatprep.subr.bf16.mxu0 0
        %269 = vmatpush1.bf16.msra.mxu0 0
        %270 = vmatprep.subr.bf16.mxu0 0
        %271 = vmatpush1.bf16.msra.mxu0 0
        %272 = vmatprep.subr.bf16.mxu0 0
        %273 = vmatpush1.bf16.msra.mxu0 0
        %274 = vmatprep.subr.bf16.mxu0 0
        %275 = vmatpush1.bf16.msra.mxu0 0
        %276 = vmatprep.subr.bf16.mxu0 0
        %277 = vmatpush1.bf16.msra.mxu0 0
        %278 = vmatprep.subr.bf16.mxu0 0
        %279 = vmatpush1.bf16.msra.mxu0 0
        %280 = vmatprep.subr.bf16.mxu0 0
        %281 = vmatpush1.bf16.msra.mxu0 0
        %282 = vmatprep.subr.bf16.mxu0 0
        %283 = vmatpush1.bf16.msra.mxu0 0
        %284 = vmatprep.subr.bf16.mxu0 0
        %285 = vmatpush1.bf16.msra.mxu0 0
        %286 = vmatprep.subr.bf16.mxu0 0
        %287 = vmatpush1.bf16.msra.mxu0 0
        %288 = vmatprep.subr.bf16.mxu0 0
        %289 = vmatpush1.bf16.msra.mxu0 0
        %290 = vmatprep.subr.bf16.mxu0 0
        %291 = vmatpush1.bf16.msra.mxu0 0
        %292 = vmatprep.subr.bf16.mxu0 0
        %293 = vmatpush1.bf16.msra.mxu0 0
        %294 = vmatprep.mubr.bf16.mxu0 0
        %295 = vmatmul.mubr.bf16.gmra.mrb[0].mxu0 %v253
        %v296 = vpop.f32.mrb[0].mxu0
        %v297 = vadd.f32 0.0, %v296
        %v298 = vpop.f32.mrb[0].mxu0
        %v299 = vadd.f32 0.0, %v298
        %v300 = vpop.f32.mrb[0].mxu0
        %v301 = vpop.f32.mrb[0].mxu0
        %302 = vdwg.mxu0
        %v303 = vld [vmem:[#allocation2] sm:$0x1]
        %305 = vset.pattern.permute.xlu0 0
        %306 = vperm.xlu0 %305, %v303
        %v307 = vpop.permute.xlu0 %306
        %v309 = vlaneseq
        %v310 = vshrl.u32 %v309, 7
        %v311 = vsub.s32 0, %v310
        %v312 = vrot.slane %v307, %v311
        %v313 = vadd.f32 %v297, %v312
        %v314 = vadd.f32 %v299, %v312
        %vm315 = vcmask 1045509
        %v316 = vsel %vm315, %v297, -inf
        %v317 = vsel %vm315, %v299, -inf
        %v318 = vmax.f32 %v316, %v317
        %319 = vmax.xlane.f32.xlu0 %v318
        %v320 = vpop.xlane.xlu0 %319
        %v321 = vsub.f32 %v297, %v320
        %v322 = vsub.f32 %v299, %v320
        %v323 = vmul.f32 %v321, 1.442695
        %v324 = vpow.pop %v323
        %v325 = vmul.f32 %v322, 1.442695
        %v326 = vpow.pop %v325
        %v327 = vsel %vm315, %v324, 0.0
        %v328 = vsel %vm315, %v326, 0.0
        %v329 = vadd.f32 %v327, %v328
        %330 = vadd.xlane.f32.xlu0 %v329
        %v331 = vpop.xlane.xlu0 %330
        %v332 = vlaneseq
        %v333 = vshrl.u32 %v332, 7
        %v334 = vsub.s32 5, %v333
        %v335 = vrot.slane %v324, %v334
        %v336 = vlaneseq
        %v337 = vshrl.u32 %v336, 7
        %v338 = vsub.s32 5, %v337
        %v339 = vrot.slane %v326, %v338
        %v340 = vmul.f32 %v297, %v335
        %v341 = vmul.f32 %v299, %v339
        %v342 = vadd.f32 %v340, %v341
        %343 = vadd.xlane.f32.xlu0 %v342
        %v344 = vpop.xlane.xlu0 %343
        %v345 = vlaneseq
        %v346 = vshrl.u32 %v345, 7
        %v347 = vsub.s32 5, %v346
        %v348 = vrot.slane %v331, %v347
        %v349 = vrcp.pop %v348
        %v350 = vmul.f32 %v344, %v349
        %v351 = vld [vmem:[%s2] sm:$0xf]
        %v352 = vld [vmem:[%s3] sm:$0xf]
        %vm353 = vcmask 64512
        %v355 = vsel %vm353, %v351, 0
        %357 = vmatprep.subr.mxu0 0.0
        %358 = vmatpush1.msra.mxu0 %v350
        %359 = vmatprep.subr.mxu0 0.0
        %360 = vmatpush1.msra.mxu0 0.0
        %361 = vmatprep.subr.mxu0 0.0
        %362 = vmatpush1.msra.mxu0 0.0
        %363 = vmatprep.subr.mxu0 0.0
        %364 = vmatpush1.msra.mxu0 0.0
        %365 = vmatprep.subr.mxu0 0.0
        %366 = vmatpush1.msra.mxu0 0.0
        %367 = vmatprep.subr.mxu0 0.0
        %368 = vmatpush1.msra.mxu0 0.0
        %369 = vmatprep.subr.mxu0 0.0
        %370 = vmatpush1.msra.mxu0 0.0
        %371 = vmatprep.subr.mxu0 0.0
        %372 = vmatpush1.msra.mxu0 0.0
        %373 = vmatprep.subr.mxu0 0.0
        %374 = vmatpush1.msra.mxu0 0.0
        %375 = vmatprep.subr.mxu0 0.0
        %376 = vmatpush1.msra.mxu0 0.0
        %377 = vmatprep.subr.mxu0 0.0
        %378 = vmatpush1.msra.mxu0 0.0
        %379 = vmatprep.subr.mxu0 0.0
        %380 = vmatpush1.msra.mxu0 0.0
        %381 = vmatprep.subr.mxu0 0.0
        %382 = vmatpush1.msra.mxu0 0.0
        %383 = vmatprep.subr.mxu0 0.0
        %384 = vmatpush1.msra.mxu0 0.0
        %385 = vmatprep.subr.mxu0 0.0
        %386 = vmatpush1.msra.mxu0 0.0
        %387 = vmatprep.subr.mxu0 0.0
        %388 = vmatpush1.msra.mxu0 0.0
        %389 = vmatprep.subr.mxu0 0.0
        %390 = vmatpush1.msra.mxu0 0.0
        %391 = vmatprep.subr.mxu0 0.0
        %392 = vmatpush1.msra.mxu0 0.0
        %393 = vmatprep.subr.mxu0 0.0
        %394 = vmatpush1.msra.mxu0 0.0
        %395 = vmatprep.subr.mxu0 0.0
        %396 = vmatpush1.msra.mxu0 0.0
        %397 = vmatprep.subr.mxu0 0.0
        %398 = vmatpush1.msra.mxu0 0.0
        %399 = vmatprep.subr.mxu0 0.0
        %400 = vmatpush1.msra.mxu0 0.0
        %401 = vmatprep.subr.mxu0 0.0
        %402 = vmatpush1.msra.mxu0 0.0
        %403 = vmatprep.subr.mxu0 0.0
        %404 = vmatpush1.msra.mxu0 0.0
        %405 = vmatprep.subr.mxu0 0.0
        %406 = vmatpush1.msra.mxu0 0.0
        %407 = vmatprep.subr.mxu0 0.0
        %408 = vmatpush1.msra.mxu0 0.0
        %409 = vmatprep.subr.mxu0 0.0
        %410 = vmatpush1.msra.mxu0 0.0
        %411 = vmatprep.subr.mxu0 0.0
        %412 = vmatpush1.msra.mxu0 0.0
        %413 = vmatprep.subr.mxu0 0.0
        %414 = vmatpush1.msra.mxu0 0.0
        %415 = vmatprep.subr.mxu0 0.0
        %416 = vmatpush1.msra.mxu0 0.0
        %417 = vmatprep.subr.mxu0 0.0
        %418 = vmatpush1.msra.mxu0 0.0
        %419 = vmatprep.subr.mxu0 0.0
        %420 = vmatpush1.msra.mxu0 0.0
        %421 = vmatprep.mubr.f32.mxu0 0.0
        %422 = vmatmul.mubr.f32.gmra.mrb[0].mxu0 %v355
        %v423 = vpop.f32.mrb[0].mxu0
        %v424 = vadd.f32 %v352, %v423
        %v425 = vpop.f32.mrb[0].mxu0
        %426 = vdwg.mxu0
        %v427 = vxor.u32 %v313, 2147483648
        %v428 = vxor.u32 %v314, 2147483648
        %v429 = vmul.f32 %v427, 1.442695
        %v430 = vpow.pop %v429
        %v431 = vmul.f32 %v428, 1.442695
        %v432 = vpow.pop %v431
        %v433 = vadd.f32 %v430, 1.0
        %v434 = vadd.f32 %v432, 1.0
        %v435 = vrcp.pop %v433
        %v436 = vmul.f32 1.0, %v435
        %v437 = vrcp.pop %v434
        %v438 = vmul.f32 1.0, %v437
        %440 = vset.pattern.permute.xlu0 0
        %441 = vperm.xlu0 %440, %v424
        %v442 = vpop.permute.xlu0 %441
        %v444 = vlaneseq
        %v445 = vshrl.u32 %v444, 7
        %v446 = vsub.s32 4, %v445
        %v447 = vrot.slane %v436, %v446
        %v448 = vlaneseq
        %v449 = vshrl.u32 %v448, 7
        %v450 = vsub.s32 4, %v449
        %v451 = vrot.slane %v438, %v450
        %v452 = vmul.f32 %v442, %v447
        %v453 = vmul.f32 %v442, %v451
        %v456 = vcombine.low %v452, %v453
        %v458 = vadd.f32 %v244, %v456
        %459 = vst [vmem:[%s242] sm:$0xff] %v458
        %s460 = sand.u32 %s142, 1
        %s461 = scalar_lea.sflag [#allocation5], %s460
        %s462 = sand.u32 %s142, 1
        %s463 = smul.addr %s462, 8
        %s464 = scalar_lea.vmem [#allocation6], %s463
        // Predicated region
        $region45: #{tpu_custom_call.1} parent=39 // pred_check
          %p465 = pneg %p152
        $region46: #{tpu_custom_call.1} parent=39 // pred_check_branch
          %467 = sbr.rel (%p465) target = $region48
        $region47: #{tpu_custom_call.1} parent=39 // pred_region
          %s469 = ssub.s32 128, 128
          %470 = vsyncadd %s461, %s469
          %s471 = smul.addr %s24, 2
          %s472 = smul.addr %s471, 64
          %s473 = scalar_lea.hbm %s5, %s472
          %s475 = sshll.u32 %s464, 4
          %s476 = int_to_ptr.vmem [resolvable:$true] %s475
          %478 = dma.vmem_to_hbm [thread:$0]  %s476, 128, %s473, %s461
        $region48: #{tpu_custom_call.1} parent=39 // pred_fallthru
          _
      $region40: #{tpu_custom_call.1} parent=5 // pred_fallthru
        _
      %p479 = scmp.le.s32.totalorder 2, %s19
      // Predicated region
      $region49: #{tpu_custom_call.1} parent=5 // pred_check
        %p480 = pneg %p479
      $region50: #{tpu_custom_call.1} parent=5 // pred_check_branch
        %482 = sbr.rel (%p480) target = $region52
      $region51: #{tpu_custom_call.1} parent=5 // pred_region
        %s483 = ssub.s32 %s19, 2
        // Predicated region
        $region53: #{tpu_custom_call.1} parent=51 // pred_check
          %p484 = pneg %p158
        $region54: #{tpu_custom_call.1} parent=51 // pred_check_branch
          %486 = sbr.rel (%p484) target = $region56
        $region55: #{tpu_custom_call.1} parent=51 // pred_region
          %s487 = sand.u32 %s143, 1
          %s488 = scalar_lea.sflag [#allocation5], %s487
          %s489 = sand.u32 %s143, 1
          %s490 = smul.addr %s489, 8
          %s491 = scalar_lea.vmem [#allocation6], %s490
          %492 = dma.done %s488, 128
        $region56: #{tpu_custom_call.1} parent=51 // pred_fallthru
          _
      $region52: #{tpu_custom_call.1} parent=5 // pred_fallthru
        _
    $region6: #{tpu_custom_call.1} parent=1 // loop_footer
      %s23 = sadd.s32 1, %s19
    $region7: #{tpu_custom_call.1} parent=1 // loop_footer_branch
      %18 = sbr.rel target = $region3
    $region8: #{tpu_custom_call.1} parent=1 // loop_exit
      _
    %493 = vsyncpa [#allocation4], 1
    %s494 = scalar_lea.sflag [#allocation4], 1
    %495 = vsyncpa %s494, 1
    %496 = vsyncpa [#allocation5], 1
    %s497 = scalar_lea.sflag [#allocation5], 1
    %498 = vsyncpa %s497, 1

</llo_original>
